<compile_context>
chip_gen: v7x
topology: tpu7x:2x2x1
jax: 0.10.0
libtpu: 0.0.40
codegen_flags: <defaults>
</compile_context>

<pallas_src>
import functools

import jax
import jax.numpy as jnp
from jax.experimental import pallas as pl
from jax.experimental.pallas import tpu as pltpu


# ---------------------------------------------------------------------------
# Kernels
# ---------------------------------------------------------------------------

def _sine_kernel(val_ref, w_ref, b_ref, o_ref):
    # val_ref: SMEM f32[1]; w_ref/b_ref/o_ref: VMEM f32[1, dim]
    # Single fused VPU multiply-add; no int math, no divide, no where.
    o_ref[...] = w_ref[...] * val_ref[0] + b_ref[...]


def _sine_batched_kernel(vals_ref, w_ref, b_ref, o_ref):
    # vals_ref: VMEM f32[block_b, 1]; w_ref/b_ref: VMEM f32[1, dim]
    # o_ref:    VMEM f32[block_b, dim]  (broadcasted FMA on the VPU)
    o_ref[...] = vals_ref[...] * w_ref[...] + b_ref[...]


# ---------------------------------------------------------------------------
# Cached pallas_call builders (one compile per (shape) signature)
# ---------------------------------------------------------------------------

@functools.lru_cache(maxsize=None)
def _single_call(dim: int):
    call = pl.pallas_call(
        _sine_kernel,
        out_shape=jax.ShapeDtypeStruct((1, dim), jnp.float32),
        in_specs=[
            pl.BlockSpec(memory_space=pltpu.SMEM),   # val scalar f32[1]
            pl.BlockSpec(memory_space=pltpu.VMEM),   # weight row (1, dim)
            pl.BlockSpec(memory_space=pltpu.VMEM),   # bias row   (1, dim)
        ],
        out_specs=pl.BlockSpec(memory_space=pltpu.VMEM),
    )
    return jax.jit(lambda v, w, b: call(v, w, b).reshape(dim))


@functools.lru_cache(maxsize=None)
def _batched_call(batch: int, dim: int):
    # Split the batch into two blocks when cleanly possible so that on v7x the
    # two TensorCores each take half (grid axis marked "parallel"); otherwise
    # one whole-array block. Block shapes respect the (8, 128) sublane rule:
    # block_b is either divisible by 8 or equal to the full batch, and the
    # lane dims equal the full array dims.
    if batch % 16 == 0:
        block_b = batch // 2
    else:
        block_b = batch
    nb = batch // block_b

    call = pl.pallas_call(
        _sine_batched_kernel,
        out_shape=jax.ShapeDtypeStruct((batch, dim), jnp.float32),
        grid=(nb,),
        in_specs=[
            pl.BlockSpec((block_b, 1), lambda i: (i, 0)),   # vals column
            pl.BlockSpec((1, dim), lambda i: (0, 0)),       # weight row
            pl.BlockSpec((1, dim), lambda i: (0, 0)),       # bias row
        ],
        out_specs=pl.BlockSpec((block_b, dim), lambda i: (i, 0)),
        compiler_params=pltpu.CompilerParams(
            dimension_semantics=("parallel",)),
    )
    return jax.jit(call)


# ---------------------------------------------------------------------------
# Module-equivalent wrapper (params laid out once, scalar math on host)
# ---------------------------------------------------------------------------

class SineEmbedder:
    """JAX/Pallas equivalent of the PyTorch SineEmbedder module."""

    def __init__(self, dim: int, effective_max: int,
                 weight: jax.Array, bias: jax.Array):
        # weight: (dim, 1) f32, bias: (dim,) f32 — same layout as nn.Linear.
        self.dim = dim
        self.effective_max = effective_max
        # Pre-layout ONCE as lane-dense (1, dim) rows; no per-call copies.
        self.w_row = jnp.asarray(weight, jnp.float32).reshape(1, dim)
        self.b_row = jnp.asarray(bias, jnp.float32).reshape(1, dim)

    def _val(self, sine: int) -> float:
        s = self.effective_max if sine == 255 else sine
        return 1.0 - s / self.effective_max

    def __call__(self, sine: int) -> jax.Array:
        val = jnp.asarray([self._val(sine)], dtype=jnp.float32)
        return _single_call(self.dim)(val, self.w_row, self.b_row)

    def embed_batch(self, sines) -> jax.Array:
        """Embed many sine values in one call -> (B, dim)."""
        vals = jnp.asarray([[self._val(s)] for s in sines], dtype=jnp.float32)
        return _batched_call(len(sines), self.dim)(vals, self.w_row, self.b_row)


# ---------------------------------------------------------------------------
# Demo / correctness check
# ---------------------------------------------------------------------------

if __name__ == "__main__":
    dim = 32
    effective_max = 100

    # Deterministic params (torch.nn.Linear(1, dim) default init range is
    # uniform(-1/sqrt(1), 1/sqrt(1)) = uniform(-1, 1)).
    key = jax.random.PRNGKey(0)
    kw, kb = jax.random.split(key)
    weight = jax.random.uniform(kw, (dim, 1), jnp.float32, minval=-1.0, maxval=1.0)
    bias = jax.random.uniform(kb, (dim,), jnp.float32, minval=-1.0, maxval=1.0)

    emb = SineEmbedder(dim, effective_max, weight, bias)

    # Single-sine path (matches the PyTorch forward exactly).
    out = jax.block_until_ready(emb(37))
    out_sentinel = jax.block_until_ready(emb(255))

    # Batched path (B = 16 sine values per launch).
    sines = [0, 1, 13, 37, 50, 64, 99, 100, 255, 2, 3, 4, 5, 6, 7, 8]
    out_batch = jax.block_until_ready(emb.embed_batch(sines))

    # Pure-JAX reference.
    def ref(sine):
        s = effective_max if sine == 255 else sine
        val = 1.0 - s / effective_max
        return weight[:, 0] * val + bias

    assert out.shape == (dim,)
    assert jnp.allclose(out, ref(37), atol=1e-6), "mismatch for sine=37"
    assert jnp.allclose(out_sentinel, ref(255), atol=1e-6), "mismatch for sine=255"

    ref_batch = jnp.stack([ref(s) for s in sines])
    assert out_batch.shape == (len(sines), dim)
    assert jnp.allclose(out_batch, ref_batch, atol=1e-6), "batched mismatch"

    print("KERNEL_OK")
</pallas_src>

<mosaic_0001>
module attributes {stable_mosaic.version = 11 : i64} {
  func.func @_sine_kernel(%arg0: memref<1xf32, #tpu.memory_space<smem>>, %arg1: memref<1x32xf32, #tpu.memory_space<vmem>>, %arg2: memref<1x32xf32, #tpu.memory_space<vmem>>, %arg3: memref<1x32xf32, #tpu.memory_space<vmem>>) attributes {dimension_semantics = [], scalar_prefetch = 0 : i64, scratch_operands = 0 : i64, tpu.core_type = #tpu.core_type<tc>} {
    %c0 = arith.constant 0 : index
    %c0_0 = arith.constant 0 : index
    %0 = vector.load %arg1[%c0, %c0_0] : memref<1x32xf32, #tpu.memory_space<vmem>>, vector<1x32xf32>
    %c0_1 = arith.constant 0 : index
    %1 = memref.load %arg0[%c0_1] : memref<1xf32, #tpu.memory_space<smem>>
    %2 = vector.broadcast %1 : f32 to vector<1x32xf32>
    %3 = arith.mulf %0, %2 : vector<1x32xf32>
    %c0_2 = arith.constant 0 : index
    %c0_3 = arith.constant 0 : index
    %4 = vector.load %arg2[%c0_2, %c0_3] : memref<1x32xf32, #tpu.memory_space<vmem>>, vector<1x32xf32>
    %5 = arith.addf %3, %4 : vector<1x32xf32>
    %c0_4 = arith.constant 0 : index
    %c0_5 = arith.constant 0 : index
    %6 = vector.load %arg3[%c0_4, %c0_5] : memref<1x32xf32, #tpu.memory_space<vmem>>, vector<1x32xf32>
    tpu.vector_store %arg3[%c0_4, %c0_5], %5 {strides = array<i32>} : memref<1x32xf32, #tpu.memory_space<vmem>>, vector<1x32xf32>,
    return
  }
}

</mosaic_0001>

<llo_original>
// kernel: _lambda_.1
$region0: #{_lambda_.1}
  #allocation0 [shape = 'u32[]', space=smem, size = 0x4, offset = 0x4, fixed_abs, tag = 'smem constant byte address 0x4 - core index']
  #allocation1 [shape = 'u32[144,128]{1,0:T(1,128)}', space=vmem, size = 0x12000, scoped, tag = 'internal scratch']
  #allocation2 [shape = 'f32[1]{0:T(128)S(6)}', space=smem, size = 0x200, scoped, tag = 'scoped memory for _lambda_.1']
  %s0 = inlined_call_operand.<no memory space> [shape: f32[1], index: 0, kind: input, shape index: {}]
  %s1 = inlined_call_operand.vmem [shape: f32[1,32], index: 1, kind: input, shape index: {}]
  %s2 = inlined_call_operand.vmem [shape: f32[1,32], index: 2, kind: input, shape index: {}]
  %s3 = inlined_call_operand.hbm [shape: f32[1,32], index: 3, kind: output, shape index: {}]
  %s4 = sld [smem:[#allocation0]]
  $region22: #{_lambda_.1} parent=0
    _
  %s6 = ssub.s32 1, %s4
  %s7 = scalar_select 0, %s6, %s4
  %8 = sst [smem:[#allocation2]] %s0
  $region1: #{_lambda_.1} parent=0
    #allocation3 [shape = 'u8[512]{0}', space=vmem, size = 0x400, scoped, tag = 'output window, operand 0, single buffered']
    #allocation4 [shape = 's32[1]{0}', space=sflag, size = 0x4, scoped, tag = 'scoped memory for _lambda_.1']
    %9 = vsyncpa [#allocation4], 0
    // Predicated region
    $region2: #{_lambda_.1} parent=1 // pred_check
      _
    $region3: #{_lambda_.1} parent=1 // pred_check_branch
      %11 = sbr.rel (0) target = $region5
    $region4: #{_lambda_.1} parent=1 // pred_region
      _
    $region5: #{_lambda_.1} parent=1 // pred_fallthru
      _
    // Predicated region
    $region6: #{_lambda_.1} parent=1 // pred_check
      _
    $region7: #{_lambda_.1} parent=1 // pred_check_branch
      %13 = sbr.rel (0) target = $region9
    $region8: #{_lambda_.1} parent=1 // pred_region
      _
    $region9: #{_lambda_.1} parent=1 // pred_fallthru
      _
    // Predicated region
    $region10: #{_lambda_.1} parent=1 // pred_check
      _
    $region11: #{_lambda_.1} parent=1 // pred_check_branch
      %15 = sbr.rel (0) target = $region13
    $region12: #{_lambda_.1} parent=1 // pred_region
      _
    $region13: #{_lambda_.1} parent=1 // pred_fallthru
      _
    %v16 = vld [vmem:[%s1] sm:$0x1]
    %s17 = sld [smem:[#allocation2]]
    %v18 = vstv %s17
    %v19 = vmul.f32 %v16, %v18
    %v20 = vld [vmem:[%s2] sm:$0x1]
    %v21 = vadd.f32 %v19, %v20
    %vm22 = vcmask 253952
    %23 = vst.msk [vmem:[#allocation3] sm:$0x1] %vm22, %v21
    // Predicated region
    $region14: #{_lambda_.1} parent=1 // pred_check
      _
    $region15: #{_lambda_.1} parent=1 // pred_check_branch
      %25 = sbr.rel (0) target = $region17
    $region16: #{_lambda_.1} parent=1 // pred_region
      %s27 = ssub.s32 16, 16
      %28 = vsyncadd [#allocation4], %s27
      %s30 = sshll.u32 [#allocation3], 4
      %s31 = int_to_ptr.vmem [resolvable:$true] %s30
      %33 = dma.vmem_to_hbm [thread:$0]  %s31, 16, %s3, [#allocation4]
    $region17: #{_lambda_.1} parent=1 // pred_fallthru
      _
    // Predicated region
    $region18: #{_lambda_.1} parent=1 // pred_check
      _
    $region19: #{_lambda_.1} parent=1 // pred_check_branch
      %35 = sbr.rel (0) target = $region21
    $region20: #{_lambda_.1} parent=1 // pred_region
      %36 = dma.done [#allocation4], 16
    $region21: #{_lambda_.1} parent=1 // pred_fallthru
      _
    %37 = vsyncpa [#allocation4], 1

</llo_original>
